<compile_context>
chip_gen: v7x
topology: tpu7x:2x2x1
jax: 0.10.0
libtpu: 0.0.40
codegen_flags: <defaults>
</compile_context>

<pallas_src>
import math

import jax
import jax.numpy as jnp
from jax.experimental import pallas as pl
from jax.experimental.pallas import tpu as pltpu


# ----------------------------------------------------------------------------
# Pallas kernel: full forward pass of the dueling head (fused layout).
# ----------------------------------------------------------------------------
def noisy_dueling_kernel(
    x_ref,        # (TB, n_obs)          f32
    w_feat_ref,   # (n_obs, 512)         bf16 (or f32)
    b_feat_ref,   # (1, 512)             f32
    w_va1_ref,    # (512, 512)           bf16  [value_hidden | advantage_hidden]
    b_va1_ref,    # (1, 512)             f32
    w_head_ref,   # (512, 1+n_actions)   bf16  block-diagonal [w_v2 | w_a2]
    b_head_ref,   # (1, 1+n_actions)     f32
    q_ref,        # (TB, n_actions)      f32 output
):
    x = x_ref[...]
    n_obs = x.shape[1]

    # --- feature layer: K = n_obs (4) is tiny -> VPU broadcast-FMAs, no MXU ---
    w_feat = w_feat_ref[...].astype(jnp.float32)          # (n_obs, 512)
    h = x[:, 0:1] * w_feat[0:1, :]
    for k in range(1, n_obs):                              # static unroll
        h = h + x[:, k:k + 1] * w_feat[k:k + 1, :]
    h = jnp.maximum(h + b_feat_ref[...], 0.0)              # (TB, 512)

    # --- fused value|advantage hidden layer: one 512x512 MXU matmul ----------
    w_va1 = w_va1_ref[...]
    va = jnp.dot(h.astype(w_va1.dtype), w_va1,
                 preferred_element_type=jnp.float32)
    va = jnp.maximum(va + b_va1_ref[...], 0.0)             # (TB, 512)

    # --- fused block-diagonal head: one matmul -> [value | advantage] --------
    w_head = w_head_ref[...]
    head = jnp.dot(va.astype(w_head.dtype), w_head,
                   preferred_element_type=jnp.float32)
    head = head + b_head_ref[...]                          # (TB, 1 + n_actions)

    value = head[:, 0:1]                                   # (TB, 1)
    adv = head[:, 1:]                                      # (TB, n_actions)

    # dueling combine: q = V + A - mean_a(A)  (mean over the LOGICAL action dim
    # only -- no padded lanes ever enter this reduction).
    q_ref[...] = value + adv - jnp.mean(adv, axis=1, keepdims=True)


def _cost_estimate(B, n_obs, n_actions, operands):
    hidden = 512
    flops = 2 * B * (n_obs * hidden + hidden * hidden + hidden * (1 + n_actions))
    bytes_accessed = sum(int(a.size) * a.dtype.itemsize for a in operands)
    bytes_accessed += B * n_actions * 4                    # output
    return pl.CostEstimate(flops=flops, transcendentals=0,
                           bytes_accessed=bytes_accessed)


def noisy_dueling_forward(x, params, *, batch_tile=256):
    """x: (B, n_obs) f32. params: fused kernel params from make_params()."""
    B, n_obs = x.shape
    n_actions = params["w_head"].shape[1] - 1

    operands = (
        x,
        params["w_feat"], params["b_feat"],
        params["w_va1"], params["b_va1"],
        params["w_head"], params["b_head"],
    )
    cost = _cost_estimate(B, n_obs, n_actions, operands)
    out_shape = jax.ShapeDtypeStruct((B, n_actions), jnp.float32)

    if B >= batch_tile and B % batch_tile == 0:
        # Batch-tiled path: grid over the batch dim, marked "parallel" so v7x's
        # two TensorCores both run; constant index_maps keep the weights
        # resident in VMEM across grid steps (DMA'd once).
        # Pick batch_tile as a multiple of 256 on v6e/v7x, 128 on v5e.
        def const_spec(arr):
            return pl.BlockSpec(arr.shape, lambda i: (0, 0))

        return pl.pallas_call(
            noisy_dueling_kernel,
            out_shape=out_shape,
            grid=(B // batch_tile,),
            in_specs=[pl.BlockSpec((batch_tile, n_obs), lambda i: (i, 0))]
                     + [const_spec(p) for p in operands[1:]],
            out_specs=pl.BlockSpec((batch_tile, n_actions), lambda i: (i, 0)),
            compiler_params=pltpu.CompilerParams(
                dimension_semantics=("parallel",)),
            cost_estimate=cost,
        )(*operands)

    # Small-batch path: everything fits comfortably in VMEM as whole arrays.
    vmem = pl.BlockSpec(memory_space=pltpu.MemorySpace.VMEM)
    return pl.pallas_call(
        noisy_dueling_kernel,
        out_shape=out_shape,
        in_specs=[vmem] * len(operands),
        out_specs=vmem,
        cost_estimate=cost,
    )(*operands)


# ----------------------------------------------------------------------------
# Parameter construction (mirrors the PyTorch __init__ / reset_noise shapes).
# ----------------------------------------------------------------------------
def init_linear(key, in_f, out_f):
    """nn.Linear default init: U(-1/sqrt(in), 1/sqrt(in)); stored (in, out)."""
    kw, kb = jax.random.split(key)
    bound = 1.0 / math.sqrt(in_f)
    w = jax.random.uniform(kw, (in_f, out_f), jnp.float32, -bound, bound)
    b = jax.random.uniform(kb, (1, out_f), jnp.float32, -bound, bound)
    return w, b


def init_noisy_linear(key, in_f, out_f, std_init=0.5):
    """NoisyLinear effective params in training mode:
       W = W_mu + W_sigma * (eps_out ⊗ eps_in),  b = b_mu + b_sigma * eps_out."""
    k_wmu, k_bmu, k_ein, k_eout = jax.random.split(key, 4)
    mu_range = 1.0 / math.sqrt(in_f)

    w_mu = jax.random.uniform(k_wmu, (in_f, out_f), jnp.float32, -mu_range, mu_range)
    w_sigma = jnp.full((in_f, out_f), std_init / math.sqrt(in_f), jnp.float32)
    b_mu = jax.random.uniform(k_bmu, (1, out_f), jnp.float32, -mu_range, mu_range)
    b_sigma = jnp.full((1, out_f), std_init / math.sqrt(out_f), jnp.float32)

    eps_in = jax.random.normal(k_ein, (in_f,), jnp.float32)
    eps_out = jax.random.normal(k_eout, (out_f,), jnp.float32)
    w_eps = jnp.outer(eps_in, eps_out)          # (in, out) == (eps_out ⊗ eps_in).T
    b_eps = eps_out[None, :]

    return w_mu + w_sigma * w_eps, b_mu + b_sigma * b_eps


def make_params(key, n_observations, n_actions, std_init=0.5,
                weight_dtype=jnp.bfloat16):
    """Returns (kernel_params, ref_params).

    kernel_params: fused / bf16 weights consumed by the Pallas kernel.
    ref_params:    unfused weights with the SAME storage rounding, for the
                   pure-JAX numerics check.
    """
    k_feat, k_v1, k_v2, k_a1, k_a2 = jax.random.split(key, 5)
    w_feat, b_feat = init_linear(k_feat, n_observations, 512)
    w_v1, b_v1 = init_noisy_linear(k_v1, 512, 256, std_init)
    w_v2, b_v2 = init_noisy_linear(k_v2, 256, 1, std_init)
    w_a1, b_a1 = init_noisy_linear(k_a1, 512, 256, std_init)
    w_a2, b_a2 = init_noisy_linear(k_a2, 256, n_actions, std_init)

    wd = lambda w: w.astype(weight_dtype)

    # Fused 512x512 hidden layer: [value_hidden | advantage_hidden].
    w_va1 = wd(jnp.concatenate([w_v1, w_a1], axis=1))        # (512, 512)
    b_va1 = jnp.concatenate([b_v1, b_a1], axis=1)            # (1, 512)

    # Block-diagonal head: col 0 = value, cols 1: = advantage.
    w_head = jnp.zeros((512, 1 + n_actions), jnp.float32)
    w_head = w_head.at[:256, 0:1].set(w_v2)
    w_head = w_head.at[256:, 1:].set(w_a2)
    w_head = wd(w_head)                                      # (512, 1+n_actions)
    b_head = jnp.concatenate([b_v2, b_a2], axis=1)           # (1, 1+n_actions)

    kernel_params = dict(
        w_feat=wd(w_feat), b_feat=b_feat,
        w_va1=w_va1, b_va1=b_va1,
        w_head=w_head, b_head=b_head,
    )
    ref_params = dict(
        w_feat=wd(w_feat).astype(jnp.float32), b_feat=b_feat,
        w_v1=wd(w_v1), b_v1=b_v1, w_v2=wd(w_v2), b_v2=b_v2,
        w_a1=wd(w_a1), b_a1=b_a1, w_a2=wd(w_a2), b_a2=b_a2,
    )
    return kernel_params, ref_params


# Pure-JAX reference (unfused structure, same weight storage rounding).
def reference_forward(x, p):
    hp = jax.lax.Precision.HIGHEST
    h = jnp.maximum(jnp.dot(x, p["w_feat"], precision=hp) + p["b_feat"], 0.0)

    def mm(a, w):
        return jnp.dot(a.astype(w.dtype), w, preferred_element_type=jnp.float32)

    v_h = jnp.maximum(mm(h, p["w_v1"]) + p["b_v1"], 0.0)
    a_h = jnp.maximum(mm(h, p["w_a1"]) + p["b_a1"], 0.0)
    value = mm(v_h, p["w_v2"]) + p["b_v2"]
    adv = mm(a_h, p["w_a2"]) + p["b_a2"]
    return value + adv - jnp.mean(adv, axis=1, keepdims=True)


if __name__ == "__main__":
    n_observations = 4   # CartPole observation dim
    n_actions = 2        # CartPole action dim

    key = jax.random.PRNGKey(0)
    k_params, k_x1, k_x2 = jax.random.split(key, 3)
    kernel_params, ref_params = make_params(k_params, n_observations, n_actions,
                                            std_init=0.5)

    # Small batch (grid-less path, whole-array VMEM blocks).
    x_small = jax.random.normal(k_x1, (2, n_observations), jnp.float32)
    q_small = jax.block_until_ready(noisy_dueling_forward(x_small, kernel_params))
    q_small_ref = reference_forward(x_small, ref_params)
    assert q_small.shape == (2, n_actions)
    assert jnp.allclose(q_small, q_small_ref, atol=2e-3, rtol=2e-3), (
        float(jnp.max(jnp.abs(q_small - q_small_ref))))

    # Larger batch exercises the batch-tiled path (parallel batch grid axis,
    # weights resident in VMEM across tiles).
    x_big = jax.random.normal(k_x2, (512, n_observations), jnp.float32)
    q_big = jax.block_until_ready(
        noisy_dueling_forward(x_big, kernel_params, batch_tile=256))
    q_big_ref = reference_forward(x_big, ref_params)
    assert q_big.shape == (512, n_actions)
    assert jnp.allclose(q_big, q_big_ref, atol=2e-3, rtol=2e-3), (
        float(jnp.max(jnp.abs(q_big - q_big_ref))))

    print("KERNEL_OK")
</pallas_src>

<mosaic_0001>
module attributes {stable_mosaic.version = 11 : i64} {
  func.func @noisy_dueling_kernel(%arg0: memref<2x4xf32, #tpu.memory_space<vmem>>, %arg1: memref<4x512xbf16, #tpu.memory_space<vmem>>, %arg2: memref<1x512xf32, #tpu.memory_space<vmem>>, %arg3: memref<512x512xbf16, #tpu.memory_space<vmem>>, %arg4: memref<1x512xf32, #tpu.memory_space<vmem>>, %arg5: memref<512x3xbf16, #tpu.memory_space<vmem>>, %arg6: memref<1x3xf32, #tpu.memory_space<vmem>>, %arg7: memref<2x2xf32, #tpu.memory_space<vmem>>) attributes {dimension_semantics = [], scalar_prefetch = 0 : i64, scratch_operands = 0 : i64, tpu.core_type = #tpu.core_type<tc>} {
    %c0 = arith.constant 0 : index
    %c0_0 = arith.constant 0 : index
    %0 = vector.load %arg0[%c0, %c0_0] : memref<2x4xf32, #tpu.memory_space<vmem>>, vector<2x4xf32>
    %c0_1 = arith.constant 0 : index
    %c0_2 = arith.constant 0 : index
    %1 = vector.load %arg1[%c0_1, %c0_2] : memref<4x512xbf16, #tpu.memory_space<vmem>>, vector<4x512xbf16>
    %2 = arith.extf %1 : vector<4x512xbf16> to vector<4x512xf32>
    %3 = vector.extract_strided_slice %0 {offsets = [0, 0], sizes = [2, 1], strides = [1, 1]} : vector<2x4xf32> to vector<2x1xf32>
    %4 = vector.extract_strided_slice %2 {offsets = [0, 0], sizes = [1, 512], strides = [1, 1]} : vector<4x512xf32> to vector<1x512xf32>
    %5 = vector.broadcast %3 : vector<2x1xf32> to vector<2x512xf32>
    %6 = vector.broadcast %4 : vector<1x512xf32> to vector<2x512xf32>
    %7 = arith.mulf %5, %6 : vector<2x512xf32>
    %8 = vector.extract_strided_slice %0 {offsets = [0, 1], sizes = [2, 1], strides = [1, 1]} : vector<2x4xf32> to vector<2x1xf32>
    %9 = vector.extract_strided_slice %2 {offsets = [1, 0], sizes = [1, 512], strides = [1, 1]} : vector<4x512xf32> to vector<1x512xf32>
    %10 = vector.broadcast %8 : vector<2x1xf32> to vector<2x512xf32>
    %11 = vector.broadcast %9 : vector<1x512xf32> to vector<2x512xf32>
    %12 = arith.mulf %10, %11 : vector<2x512xf32>
    %13 = arith.addf %7, %12 : vector<2x512xf32>
    %14 = vector.extract_strided_slice %0 {offsets = [0, 2], sizes = [2, 1], strides = [1, 1]} : vector<2x4xf32> to vector<2x1xf32>
    %15 = vector.extract_strided_slice %2 {offsets = [2, 0], sizes = [1, 512], strides = [1, 1]} : vector<4x512xf32> to vector<1x512xf32>
    %16 = vector.broadcast %14 : vector<2x1xf32> to vector<2x512xf32>
    %17 = vector.broadcast %15 : vector<1x512xf32> to vector<2x512xf32>
    %18 = arith.mulf %16, %17 : vector<2x512xf32>
    %19 = arith.addf %13, %18 : vector<2x512xf32>
    %20 = vector.extract_strided_slice %0 {offsets = [0, 3], sizes = [2, 1], strides = [1, 1]} : vector<2x4xf32> to vector<2x1xf32>
    %21 = vector.extract_strided_slice %2 {offsets = [3, 0], sizes = [1, 512], strides = [1, 1]} : vector<4x512xf32> to vector<1x512xf32>
    %22 = vector.broadcast %20 : vector<2x1xf32> to vector<2x512xf32>
    %23 = vector.broadcast %21 : vector<1x512xf32> to vector<2x512xf32>
    %24 = arith.mulf %22, %23 : vector<2x512xf32>
    %25 = arith.addf %19, %24 : vector<2x512xf32>
    %c0_3 = arith.constant 0 : index
    %c0_4 = arith.constant 0 : index
    %26 = vector.load %arg2[%c0_3, %c0_4] : memref<1x512xf32, #tpu.memory_space<vmem>>, vector<1x512xf32>
    %27 = vector.broadcast %26 : vector<1x512xf32> to vector<2x512xf32>
    %28 = arith.addf %25, %27 : vector<2x512xf32>
    %cst = arith.constant 0.000000e+00 : f32
    %29 = vector.broadcast %cst : f32 to vector<2x512xf32>
    %30 = arith.maximumf %28, %29 : vector<2x512xf32>
    %c0_5 = arith.constant 0 : index
    %c0_6 = arith.constant 0 : index
    %31 = vector.load %arg3[%c0_5, %c0_6] : memref<512x512xbf16, #tpu.memory_space<vmem>>, vector<512x512xbf16>
    %32 = arith.truncf %30 : vector<2x512xf32> to vector<2x512xbf16>
    %cst_7 = arith.constant dense<0.000000e+00> : vector<2x512xf32>
    %33 = tpu.matmul %32, %31, %cst_7 {dimension_numbers = #tpu.dot_dimension_numbers<[1], [0], [0], [1], [0, 0, 1, 1], [], []>} : vector<2x512xbf16>, vector<512x512xbf16>, vector<2x512xf32> -> vector<2x512xf32>
    %c0_8 = arith.constant 0 : index
    %c0_9 = arith.constant 0 : index
    %34 = vector.load %arg4[%c0_8, %c0_9] : memref<1x512xf32, #tpu.memory_space<vmem>>, vector<1x512xf32>
    %35 = vector.broadcast %34 : vector<1x512xf32> to vector<2x512xf32>
    %36 = arith.addf %33, %35 : vector<2x512xf32>
    %cst_10 = arith.constant 0.000000e+00 : f32
    %37 = vector.broadcast %cst_10 : f32 to vector<2x512xf32>
    %38 = arith.maximumf %36, %37 : vector<2x512xf32>
    %c0_11 = arith.constant 0 : index
    %c0_12 = arith.constant 0 : index
    %39 = vector.load %arg5[%c0_11, %c0_12] : memref<512x3xbf16, #tpu.memory_space<vmem>>, vector<512x3xbf16>
    %40 = arith.truncf %38 : vector<2x512xf32> to vector<2x512xbf16>
    %cst_13 = arith.constant dense<0.000000e+00> : vector<2x3xf32>
    %41 = tpu.matmul %40, %39, %cst_13 {dimension_numbers = #tpu.dot_dimension_numbers<[1], [0], [0], [1], [0, 0, 1, 1], [], []>} : vector<2x512xbf16>, vector<512x3xbf16>, vector<2x3xf32> -> vector<2x3xf32>
    %c0_14 = arith.constant 0 : index
    %c0_15 = arith.constant 0 : index
    %42 = vector.load %arg6[%c0_14, %c0_15] : memref<1x3xf32, #tpu.memory_space<vmem>>, vector<1x3xf32>
    %43 = vector.broadcast %42 : vector<1x3xf32> to vector<2x3xf32>
    %44 = arith.addf %41, %43 : vector<2x3xf32>
    %45 = vector.extract_strided_slice %44 {offsets = [0, 0], sizes = [2, 1], strides = [1, 1]} : vector<2x3xf32> to vector<2x1xf32>
    %46 = vector.extract_strided_slice %44 {offsets = [0, 1], sizes = [2, 2], strides = [1, 1]} : vector<2x3xf32> to vector<2x2xf32>
    %47 = vector.broadcast %45 : vector<2x1xf32> to vector<2x2xf32>
    %48 = arith.addf %47, %46 : vector<2x2xf32>
    %cst_16 = arith.constant dense<0.000000e+00> : vector<2xf32>
    %49 = vector.multi_reduction <add>, %46, %cst_16 [1] : vector<2x2xf32> to vector<2xf32>
    %50 = vector.shape_cast %49 : vector<2xf32> to vector<2x1xf32>
    %cst_17 = arith.constant 2.000000e+00 : f32
    %51 = vector.broadcast %cst_17 : f32 to vector<2x1xf32>
    %52 = arith.divf %50, %51 : vector<2x1xf32>
    %53 = vector.broadcast %52 : vector<2x1xf32> to vector<2x2xf32>
    %54 = arith.subf %48, %53 : vector<2x2xf32>
    %c0_18 = arith.constant 0 : index
    %c0_19 = arith.constant 0 : index
    %55 = vector.load %arg7[%c0_18, %c0_19] : memref<2x2xf32, #tpu.memory_space<vmem>>, vector<2x2xf32>
    tpu.vector_store %arg7[%c0_18, %c0_19], %54 {strides = array<i32>} : memref<2x2xf32, #tpu.memory_space<vmem>>, vector<2x2xf32>,
    return
  }
}

</mosaic_0001>

<llo_original>
// kernel: tpu_custom_call.1
$region0: #{tpu_custom_call.1}
  #allocation0 [shape = 'u32[]', space=smem, size = 0x4, offset = 0x4, fixed_abs, tag = 'smem constant byte address 0x4 - core index']
  #allocation1 [shape = 'u32[144,128]{1,0:T(1,128)}', space=vmem, size = 0x12000, scoped, tag = 'internal scratch']
  %s0 = inlined_call_operand.vmem [shape: f32[2,4], index: 0, kind: input, shape index: {}]
  %s1 = inlined_call_operand.vmem [shape: bf16[4,512], index: 1, kind: input, shape index: {}]
  %s2 = inlined_call_operand.vmem [shape: f32[1,512], index: 2, kind: input, shape index: {}]
  %s3 = inlined_call_operand.hbm [shape: bf16[512,512], index: 3, kind: input, shape index: {}]
  %s4 = inlined_call_operand.vmem [shape: f32[1,512], index: 4, kind: input, shape index: {}]
  %s5 = inlined_call_operand.vmem [shape: bf16[512,3], index: 5, kind: input, shape index: {}]
  %s6 = inlined_call_operand.vmem [shape: f32[1,3], index: 6, kind: input, shape index: {}]
  %s7 = inlined_call_operand.hbm [shape: f32[2,2], index: 7, kind: output, shape index: {}]
  %s8 = sld [smem:[#allocation0]]
  $region42: #{tpu_custom_call.1} parent=0
    _
  %s10 = ssub.s32 1, %s8
  %s11 = scalar_select 0, %s10, %s8
  $region1: #{tpu_custom_call.1} parent=0
    #allocation2 [shape = 'u8[524288]{0}', space=vmem, size = 0x80000, scoped, tag = 'input window, operand 3, single buffered']
    #allocation3 [shape = 's32[1]{0}', space=sflag, size = 0x4, scoped, tag = 'scoped memory for tpu_custom_call.1']
    #allocation4 [shape = 's32[1]{0}', space=sflag, size = 0x4, scoped, tag = 'scoped memory for tpu_custom_call.1']
    #allocation5 [shape = 'u8[1024]{0}', space=vmem, size = 0x400, scoped, tag = 'output window, operand 0, single buffered']
    %12 = vsyncpa [#allocation3], 0
    %13 = vsyncpa [#allocation4], 0
    // Predicated region
    $region2: #{tpu_custom_call.1} parent=1 // pred_check
      _
    $region3: #{tpu_custom_call.1} parent=1 // pred_check_branch
      %15 = sbr.rel (0) target = $region5
    $region4: #{tpu_custom_call.1} parent=1 // pred_region
      _
    $region5: #{tpu_custom_call.1} parent=1 // pred_fallthru
      _
    // Predicated region
    $region6: #{tpu_custom_call.1} parent=1 // pred_check
      _
    $region7: #{tpu_custom_call.1} parent=1 // pred_check_branch
      %17 = sbr.rel (0) target = $region9
    $region8: #{tpu_custom_call.1} parent=1 // pred_region
      _
    $region9: #{tpu_custom_call.1} parent=1 // pred_fallthru
      _
    // Predicated region
    $region10: #{tpu_custom_call.1} parent=1 // pred_check
      _
    $region11: #{tpu_custom_call.1} parent=1 // pred_check_branch
      %19 = sbr.rel (0) target = $region13
    $region12: #{tpu_custom_call.1} parent=1 // pred_region
      _
    $region13: #{tpu_custom_call.1} parent=1 // pred_fallthru
      _
    // Predicated region
    $region14: #{tpu_custom_call.1} parent=1 // pred_check
      _
    $region15: #{tpu_custom_call.1} parent=1 // pred_check_branch
      %21 = sbr.rel (0) target = $region17
    $region16: #{tpu_custom_call.1} parent=1 // pred_region
      %s23 = ssub.s32 16384, 16384
      %24 = vsyncadd [#allocation3], %s23
      %s25 = sshll.u32 [#allocation2], 4
      %s26 = int_to_ptr.vmem [resolvable:$true] %s25
      %31 = dma.hbm_to_vmem [thread:$0]  %s3, 16384, %s26, [#allocation3], 256, 256, 16
    $region17: #{tpu_custom_call.1} parent=1 // pred_fallthru
      _
    // Predicated region
    $region18: #{tpu_custom_call.1} parent=1 // pred_check
      _
    $region19: #{tpu_custom_call.1} parent=1 // pred_check_branch
      %33 = sbr.rel (0) target = $region21
    $region20: #{tpu_custom_call.1} parent=1 // pred_region
      _
    $region21: #{tpu_custom_call.1} parent=1 // pred_fallthru
      _
    // Predicated region
    $region22: #{tpu_custom_call.1} parent=1 // pred_check
      _
    $region23: #{tpu_custom_call.1} parent=1 // pred_check_branch
      %35 = sbr.rel (0) target = $region25
    $region24: #{tpu_custom_call.1} parent=1 // pred_region
      _
    $region25: #{tpu_custom_call.1} parent=1 // pred_fallthru
      _
    // Predicated region
    $region26: #{tpu_custom_call.1} parent=1 // pred_check
      _
    $region27: #{tpu_custom_call.1} parent=1 // pred_check_branch
      %37 = sbr.rel (0) target = $region29
    $region28: #{tpu_custom_call.1} parent=1 // pred_region
      _
    $region29: #{tpu_custom_call.1} parent=1 // pred_fallthru
      _
    // Predicated region
    $region30: #{tpu_custom_call.1} parent=1 // pred_check
      _
    $region31: #{tpu_custom_call.1} parent=1 // pred_check_branch
      %39 = sbr.rel (0) target = $region33
    $region32: #{tpu_custom_call.1} parent=1 // pred_region
      %40 = dma.done [#allocation3], 16384
    $region33: #{tpu_custom_call.1} parent=1 // pred_fallthru
      _
    %v42 = vld [vmem:[%s0] sm:$0x3]
    %v43 = vld [vmem:[%s1] sm:$0xff]
    %v44 = vunpack.c.l.bf16 %v43
    %v45 = vunpack.c.h.bf16 %v43
    %47 = vset.pattern.permute.xlu0 0
    %48 = vperm.xlu0 %47, %v42
    %v49 = vpop.permute.xlu0 %48
    %v53 = vlaneseq
    %v54 = vshrl.u32 %v53, 7
    %v55 = vsub.s32 0, %v54
    %v56 = vrot.slane %v44, %v55
    %v57 = vlaneseq
    %v58 = vshrl.u32 %v57, 7
    %v59 = vsub.s32 4, %v58
    %v60 = vrot.slane %v44, %v59
    %v61 = vlaneseq
    %v62 = vshrl.u32 %v61, 7
    %v63 = vsub.s32 0, %v62
    %v64 = vrot.slane %v45, %v63
    %v65 = vlaneseq
    %v66 = vshrl.u32 %v65, 7
    %v67 = vsub.s32 4, %v66
    %v68 = vrot.slane %v45, %v67
    %v73 = vlaneseq
    %v74 = vshrl.u32 %v73, 7
    %v75 = vsub.s32 0, %v74
    %v76 = vrot.slane %v56, %v75
    %v77 = vlaneseq
    %v78 = vshrl.u32 %v77, 7
    %v79 = vsub.s32 0, %v78
    %v80 = vrot.slane %v60, %v79
    %v81 = vlaneseq
    %v82 = vshrl.u32 %v81, 7
    %v83 = vsub.s32 0, %v82
    %v84 = vrot.slane %v64, %v83
    %v85 = vlaneseq
    %v86 = vshrl.u32 %v85, 7
    %v87 = vsub.s32 0, %v86
    %v88 = vrot.slane %v68, %v87
    %v89 = vmul.f32 %v49, %v76
    %v90 = vmul.f32 %v49, %v80
    %v91 = vmul.f32 %v49, %v84
    %v92 = vmul.f32 %v49, %v88
    %93 = vset.pattern.permute.xlu0 1
    %94 = vperm.xlu0 %93, %v42
    %v95 = vpop.permute.xlu0 %94
    %v97 = vlaneseq
    %v98 = vshrl.u32 %v97, 7
    %v99 = vsub.s32 1, %v98
    %v100 = vrot.slane %v44, %v99
    %v101 = vlaneseq
    %v102 = vshrl.u32 %v101, 7
    %v103 = vsub.s32 5, %v102
    %v104 = vrot.slane %v44, %v103
    %v105 = vlaneseq
    %v106 = vshrl.u32 %v105, 7
    %v107 = vsub.s32 1, %v106
    %v108 = vrot.slane %v45, %v107
    %v109 = vlaneseq
    %v110 = vshrl.u32 %v109, 7
    %v111 = vsub.s32 5, %v110
    %v112 = vrot.slane %v45, %v111
    %v117 = vlaneseq
    %v118 = vshrl.u32 %v117, 7
    %v119 = vsub.s32 1, %v118
    %v120 = vrot.slane %v100, %v119
    %v121 = vlaneseq
    %v122 = vshrl.u32 %v121, 7
    %v123 = vsub.s32 1, %v122
    %v124 = vrot.slane %v104, %v123
    %v125 = vlaneseq
    %v126 = vshrl.u32 %v125, 7
    %v127 = vsub.s32 1, %v126
    %v128 = vrot.slane %v108, %v127
    %v129 = vlaneseq
    %v130 = vshrl.u32 %v129, 7
    %v131 = vsub.s32 1, %v130
    %v132 = vrot.slane %v112, %v131
    %v133 = vmul.f32 %v95, %v120
    %v134 = vmul.f32 %v95, %v124
    %v135 = vmul.f32 %v95, %v128
    %v136 = vmul.f32 %v95, %v132
    %v137 = vadd.f32 %v89, %v133
    %v138 = vadd.f32 %v90, %v134
    %v139 = vadd.f32 %v91, %v135
    %v140 = vadd.f32 %v92, %v136
    %141 = vset.pattern.permute.xlu0 2
    %142 = vperm.xlu0 %141, %v42
    %v143 = vpop.permute.xlu0 %142
    %v145 = vlaneseq
    %v146 = vshrl.u32 %v145, 7
    %v147 = vsub.s32 2, %v146
    %v148 = vrot.slane %v44, %v147
    %v149 = vlaneseq
    %v150 = vshrl.u32 %v149, 7
    %v151 = vsub.s32 6, %v150
    %v152 = vrot.slane %v44, %v151
    %v153 = vlaneseq
    %v154 = vshrl.u32 %v153, 7
    %v155 = vsub.s32 2, %v154
    %v156 = vrot.slane %v45, %v155
    %v157 = vlaneseq
    %v158 = vshrl.u32 %v157, 7
    %v159 = vsub.s32 6, %v158
    %v160 = vrot.slane %v45, %v159
    %v165 = vlaneseq
    %v166 = vshrl.u32 %v165, 7
    %v167 = vsub.s32 2, %v166
    %v168 = vrot.slane %v148, %v167
    %v169 = vlaneseq
    %v170 = vshrl.u32 %v169, 7
    %v171 = vsub.s32 2, %v170
    %v172 = vrot.slane %v152, %v171
    %v173 = vlaneseq
    %v174 = vshrl.u32 %v173, 7
    %v175 = vsub.s32 2, %v174
    %v176 = vrot.slane %v156, %v175
    %v177 = vlaneseq
    %v178 = vshrl.u32 %v177, 7
    %v179 = vsub.s32 2, %v178
    %v180 = vrot.slane %v160, %v179
    %v181 = vmul.f32 %v143, %v168
    %v182 = vmul.f32 %v143, %v172
    %v183 = vmul.f32 %v143, %v176
    %v184 = vmul.f32 %v143, %v180
    %v185 = vadd.f32 %v137, %v181
    %v186 = vadd.f32 %v138, %v182
    %v187 = vadd.f32 %v139, %v183
    %v188 = vadd.f32 %v140, %v184
    %189 = vset.pattern.permute.xlu0 3
    %190 = vperm.xlu0 %189, %v42
    %v191 = vpop.permute.xlu0 %190
    %v193 = vlaneseq
    %v194 = vshrl.u32 %v193, 7
    %v195 = vsub.s32 3, %v194
    %v196 = vrot.slane %v44, %v195
    %v197 = vlaneseq
    %v198 = vshrl.u32 %v197, 7
    %v199 = vsub.s32 7, %v198
    %v200 = vrot.slane %v44, %v199
    %v201 = vlaneseq
    %v202 = vshrl.u32 %v201, 7
    %v203 = vsub.s32 3, %v202
    %v204 = vrot.slane %v45, %v203
    %v205 = vlaneseq
    %v206 = vshrl.u32 %v205, 7
    %v207 = vsub.s32 7, %v206
    %v208 = vrot.slane %v45, %v207
    %v213 = vlaneseq
    %v214 = vshrl.u32 %v213, 7
    %v215 = vsub.s32 3, %v214
    %v216 = vrot.slane %v196, %v215
    %v217 = vlaneseq
    %v218 = vshrl.u32 %v217, 7
    %v219 = vsub.s32 3, %v218
    %v220 = vrot.slane %v200, %v219
    %v221 = vlaneseq
    %v222 = vshrl.u32 %v221, 7
    %v223 = vsub.s32 3, %v222
    %v224 = vrot.slane %v204, %v223
    %v225 = vlaneseq
    %v226 = vshrl.u32 %v225, 7
    %v227 = vsub.s32 3, %v226
    %v228 = vrot.slane %v208, %v227
    %v229 = vmul.f32 %v191, %v216
    %v230 = vmul.f32 %v191, %v220
    %v231 = vmul.f32 %v191, %v224
    %v232 = vmul.f32 %v191, %v228
    %v233 = vadd.f32 %v185, %v229
    %v234 = vadd.f32 %v186, %v230
    %v235 = vadd.f32 %v187, %v231
    %v236 = vadd.f32 %v188, %v232
    %v237 = vld [vmem:[%s2] sm:$0xf]
    %v239 = vlaneseq
    %v240 = vshrl.u32 %v239, 7
    %v241 = vsub.s32 0, %v240
    %v242 = vrot.slane %v237, %v241
    %v243 = vlaneseq
    %v244 = vshrl.u32 %v243, 7
    %v245 = vsub.s32 1, %v244
    %v246 = vrot.slane %v237, %v245
    %v247 = vlaneseq
    %v248 = vshrl.u32 %v247, 7
    %v249 = vsub.s32 2, %v248
    %v250 = vrot.slane %v237, %v249
    %v251 = vlaneseq
    %v252 = vshrl.u32 %v251, 7
    %v253 = vsub.s32 3, %v252
    %v254 = vrot.slane %v237, %v253
    %v259 = vadd.f32 %v233, %v242
    %v260 = vadd.f32 %v234, %v246
    %v261 = vadd.f32 %v235, %v250
    %v262 = vadd.f32 %v236, %v254
    %v263 = vmax.f32 %v259, 0.0
    %v264 = vmax.f32 %v260, 0.0
    %v265 = vmax.f32 %v261, 0.0
    %v266 = vmax.f32 %v262, 0.0
    %v267 = vld [vmem:[#allocation2] sm:$0xff]
    %v268 = vld [vmem:[#allocation2 + $0x8] sm:$0xff]
    %v269 = vld [vmem:[#allocation2 + $0x10] sm:$0xff]
    %v270 = vld [vmem:[#allocation2 + $0x18] sm:$0xff]
    %v271 = vld [vmem:[#allocation2 + $0x20] sm:$0xff]
    %v272 = vld [vmem:[#allocation2 + $0x28] sm:$0xff]
    %v273 = vld [vmem:[#allocation2 + $0x30] sm:$0xff]
    %v274 = vld [vmem:[#allocation2 + $0x38] sm:$0xff]
    %v275 = vld [vmem:[#allocation2 + $0x40] sm:$0xff]
    %v276 = vld [vmem:[#allocation2 + $0x48] sm:$0xff]
    %v277 = vld [vmem:[#allocation2 + $0x50] sm:$0xff]
    %v278 = vld [vmem:[#allocation2 + $0x58] sm:$0xff]
    %v279 = vld [vmem:[#allocation2 + $0x60] sm:$0xff]
    %v280 = vld [vmem:[#allocation2 + $0x68] sm:$0xff]
    %v281 = vld [vmem:[#allocation2 + $0x70] sm:$0xff]
    %v282 = vld [vmem:[#allocation2 + $0x78] sm:$0xff]
    %v283 = vld [vmem:[#allocation2 + $0x80] sm:$0xff]
    %v284 = vld [vmem:[#allocation2 + $0x88] sm:$0xff]
    %v285 = vld [vmem:[#allocation2 + $0x90] sm:$0xff]
    %v286 = vld [vmem:[#allocation2 + $0x98] sm:$0xff]
    %v287 = vld [vmem:[#allocation2 + $0xa0] sm:$0xff]
    %v288 = vld [vmem:[#allocation2 + $0xa8] sm:$0xff]
    %v289 = vld [vmem:[#allocation2 + $0xb0] sm:$0xff]
    %v290 = vld [vmem:[#allocation2 + $0xb8] sm:$0xff]
    %v291 = vld [vmem:[#allocation2 + $0xc0] sm:$0xff]
    %v292 = vld [vmem:[#allocation2 + $0xc8] sm:$0xff]
    %v293 = vld [vmem:[#allocation2 + $0xd0] sm:$0xff]
    %v294 = vld [vmem:[#allocation2 + $0xd8] sm:$0xff]
    %v295 = vld [vmem:[#allocation2 + $0xe0] sm:$0xff]
    %v296 = vld [vmem:[#allocation2 + $0xe8] sm:$0xff]
    %v297 = vld [vmem:[#allocation2 + $0xf0] sm:$0xff]
    %v298 = vld [vmem:[#allocation2 + $0xf8] sm:$0xff]
    %v299 = vld [vmem:[#allocation2 + $0x100] sm:$0xff]
    %v300 = vld [vmem:[#allocation2 + $0x108] sm:$0xff]
    %v301 = vld [vmem:[#allocation2 + $0x110] sm:$0xff]
    %v302 = vld [vmem:[#allocation2 + $0x118] sm:$0xff]
    %v303 = vld [vmem:[#allocation2 + $0x120] sm:$0xff]
    %v304 = vld [vmem:[#allocation2 + $0x128] sm:$0xff]
    %v305 = vld [vmem:[#allocation2 + $0x130] sm:$0xff]
    %v306 = vld [vmem:[#allocation2 + $0x138] sm:$0xff]
    %v307 = vld [vmem:[#allocation2 + $0x140] sm:$0xff]
    %v308 = vld [vmem:[#allocation2 + $0x148] sm:$0xff]
    %v309 = vld [vmem:[#allocation2 + $0x150] sm:$0xff]
    %v310 = vld [vmem:[#allocation2 + $0x158] sm:$0xff]
    %v311 = vld [vmem:[#allocation2 + $0x160] sm:$0xff]
    %v312 = vld [vmem:[#allocation2 + $0x168] sm:$0xff]
    %v313 = vld [vmem:[#allocation2 + $0x170] sm:$0xff]
    %v314 = vld [vmem:[#allocation2 + $0x178] sm:$0xff]
    %v315 = vld [vmem:[#allocation2 + $0x180] sm:$0xff]
    %v316 = vld [vmem:[#allocation2 + $0x188] sm:$0xff]
    %v317 = vld [vmem:[#allocation2 + $0x190] sm:$0xff]
    %v318 = vld [vmem:[#allocation2 + $0x198] sm:$0xff]
    %v319 = vld [vmem:[#allocation2 + $0x1a0] sm:$0xff]
    %v320 = vld [vmem:[#allocation2 + $0x1a8] sm:$0xff]
    %v321 = vld [vmem:[#allocation2 + $0x1b0] sm:$0xff]
    %v322 = vld [vmem:[#allocation2 + $0x1b8] sm:$0xff]
    %v323 = vld [vmem:[#allocation2 + $0x1c0] sm:$0xff]
    %v324 = vld [vmem:[#allocation2 + $0x1c8] sm:$0xff]
    %v325 = vld [vmem:[#allocation2 + $0x1d0] sm:$0xff]
    %v326 = vld [vmem:[#allocation2 + $0x1d8] sm:$0xff]
    %v327 = vld [vmem:[#allocation2 + $0x1e0] sm:$0xff]
    %v328 = vld [vmem:[#allocation2 + $0x1e8] sm:$0xff]
    %v329 = vld [vmem:[#allocation2 + $0x1f0] sm:$0xff]
    %v330 = vld [vmem:[#allocation2 + $0x1f8] sm:$0xff]
    %v331 = vld [vmem:[#allocation2 + $0x200] sm:$0xff]
    %v332 = vld [vmem:[#allocation2 + $0x208] sm:$0xff]
    %v333 = vld [vmem:[#allocation2 + $0x210] sm:$0xff]
    %v334 = vld [vmem:[#allocation2 + $0x218] sm:$0xff]
    %v335 = vld [vmem:[#allocation2 + $0x220] sm:$0xff]
    %v336 = vld [vmem:[#allocation2 + $0x228] sm:$0xff]
    %v337 = vld [vmem:[#allocation2 + $0x230] sm:$0xff]
    %v338 = vld [vmem:[#allocation2 + $0x238] sm:$0xff]
    %v339 = vld [vmem:[#allocation2 + $0x240] sm:$0xff]
    %v340 = vld [vmem:[#allocation2 + $0x248] sm:$0xff]
    %v341 = vld [vmem:[#allocation2 + $0x250] sm:$0xff]
    %v342 = vld [vmem:[#allocation2 + $0x258] sm:$0xff]
    %v343 = vld [vmem:[#allocation2 + $0x260] sm:$0xff]
    %v344 = vld [vmem:[#allocation2 + $0x268] sm:$0xff]
    %v345 = vld [vmem:[#allocation2 + $0x270] sm:$0xff]
    %v346 = vld [vmem:[#allocation2 + $0x278] sm:$0xff]
    %v347 = vld [vmem:[#allocation2 + $0x280] sm:$0xff]
    %v348 = vld [vmem:[#allocation2 + $0x288] sm:$0xff]
    %v349 = vld [vmem:[#allocation2 + $0x290] sm:$0xff]
    %v350 = vld [vmem:[#allocation2 + $0x298] sm:$0xff]
    %v351 = vld [vmem:[#allocation2 + $0x2a0] sm:$0xff]
    %v352 = vld [vmem:[#allocation2 + $0x2a8] sm:$0xff]
    %v353 = vld [vmem:[#allocation2 + $0x2b0] sm:$0xff]
    %v354 = vld [vmem:[#allocation2 + $0x2b8] sm:$0xff]
    %v355 = vld [vmem:[#allocation2 + $0x2c0] sm:$0xff]
    %v356 = vld [vmem:[#allocation2 + $0x2c8] sm:$0xff]
    %v357 = vld [vmem:[#allocation2 + $0x2d0] sm:$0xff]
    %v358 = vld [vmem:[#allocation2 + $0x2d8] sm:$0xff]
    %v359 = vld [vmem:[#allocation2 + $0x2e0] sm:$0xff]
    %v360 = vld [vmem:[#allocation2 + $0x2e8] sm:$0xff]
    %v361 = vld [vmem:[#allocation2 + $0x2f0] sm:$0xff]
    %v362 = vld [vmem:[#allocation2 + $0x2f8] sm:$0xff]
    %v363 = vld [vmem:[#allocation2 + $0x300] sm:$0xff]
    %v364 = vld [vmem:[#allocation2 + $0x308] sm:$0xff]
    %v365 = vld [vmem:[#allocation2 + $0x310] sm:$0xff]
    %v366 = vld [vmem:[#allocation2 + $0x318] sm:$0xff]
    %v367 = vld [vmem:[#allocation2 + $0x320] sm:$0xff]
    %v368 = vld [vmem:[#allocation2 + $0x328] sm:$0xff]
    %v369 = vld [vmem:[#allocation2 + $0x330] sm:$0xff]
    %v370 = vld [vmem:[#allocation2 + $0x338] sm:$0xff]
    %v371 = vld [vmem:[#allocation2 + $0x340] sm:$0xff]
    %v372 = vld [vmem:[#allocation2 + $0x348] sm:$0xff]
    %v373 = vld [vmem:[#allocation2 + $0x350] sm:$0xff]
    %v374 = vld [vmem:[#allocation2 + $0x358] sm:$0xff]
    %v375 = vld [vmem:[#allocation2 + $0x360] sm:$0xff]
    %v376 = vld [vmem:[#allocation2 + $0x368] sm:$0xff]
    %v377 = vld [vmem:[#allocation2 + $0x370] sm:$0xff]
    %v378 = vld [vmem:[#allocation2 + $0x378] sm:$0xff]
    %v379 = vld [vmem:[#allocation2 + $0x380] sm:$0xff]
    %v380 = vld [vmem:[#allocation2 + $0x388] sm:$0xff]
    %v381 = vld [vmem:[#allocation2 + $0x390] sm:$0xff]
    %v382 = vld [vmem:[#allocation2 + $0x398] sm:$0xff]
    %v383 = vld [vmem:[#allocation2 + $0x3a0] sm:$0xff]
    %v384 = vld [vmem:[#allocation2 + $0x3a8] sm:$0xff]
    %v385 = vld [vmem:[#allocation2 + $0x3b0] sm:$0xff]
    %v386 = vld [vmem:[#allocation2 + $0x3b8] sm:$0xff]
    %v387 = vld [vmem:[#allocation2 + $0x3c0] sm:$0xff]
    %v388 = vld [vmem:[#allocation2 + $0x3c8] sm:$0xff]
    %v389 = vld [vmem:[#allocation2 + $0x3d0] sm:$0xff]
    %v390 = vld [vmem:[#allocation2 + $0x3d8] sm:$0xff]
    %v391 = vld [vmem:[#allocation2 + $0x3e0] sm:$0xff]
    %v392 = vld [vmem:[#allocation2 + $0x3e8] sm:$0xff]
    %v393 = vld [vmem:[#allocation2 + $0x3f0] sm:$0xff]
    %v394 = vld [vmem:[#allocation2 + $0x3f8] sm:$0xff]
    %v395 = vpack.c.bf16 %v263, %v263
    %v396 = vpack.c.bf16 %v264, %v264
    %v397 = vpack.c.bf16 %v265, %v265
    %v398 = vpack.c.bf16 %v266, %v266
    %v399 = vld [vmem:[%s4] sm:$0xf]
    %v401 = vlaneseq
    %v402 = vshrl.u32 %v401, 7
    %v403 = vsub.s32 0, %v402
    %v404 = vrot.slane %v399, %v403
    %v405 = vlaneseq
    %v406 = vshrl.u32 %v405, 7
    %v407 = vsub.s32 1, %v406
    %v408 = vrot.slane %v399, %v407
    %v409 = vlaneseq
    %v410 = vshrl.u32 %v409, 7
    %v411 = vsub.s32 2, %v410
    %v412 = vrot.slane %v399, %v411
    %v413 = vlaneseq
    %v414 = vshrl.u32 %v413, 7
    %v415 = vsub.s32 3, %v414
    %v416 = vrot.slane %v399, %v415
    %v549 = vunpack.c.l.b16 %v267
    %v550 = vunpack.c.h.b16 %v267
    %v551 = vunpack.c.l.b16 %v268
    %v552 = vunpack.c.h.b16 %v268
    %v553 = vunpack.c.l.b16 %v269
    %v554 = vunpack.c.h.b16 %v269
    %v555 = vunpack.c.l.b16 %v270
    %v556 = vunpack.c.h.b16 %v270
    %v557 = vunpack.c.l.b16 %v271
    %v558 = vunpack.c.h.b16 %v271
    %v559 = vunpack.c.l.b16 %v272
    %v560 = vunpack.c.h.b16 %v272
    %v561 = vunpack.c.l.b16 %v273
    %v562 = vunpack.c.h.b16 %v273
    %v563 = vunpack.c.l.b16 %v274
    %v564 = vunpack.c.h.b16 %v274
    %v565 = vunpack.c.l.b16 %v275
    %v566 = vunpack.c.h.b16 %v275
    %v567 = vunpack.c.l.b16 %v276
    %v568 = vunpack.c.h.b16 %v276
    %v569 = vunpack.c.l.b16 %v277
    %v570 = vunpack.c.h.b16 %v277
    %v571 = vunpack.c.l.b16 %v278
    %v572 = vunpack.c.h.b16 %v278
    %v573 = vunpack.c.l.b16 %v279
    %v574 = vunpack.c.h.b16 %v279
    %v575 = vunpack.c.l.b16 %v280
    %v576 = vunpack.c.h.b16 %v280
    %v577 = vunpack.c.l.b16 %v281
    %v578 = vunpack.c.h.b16 %v281
    %v579 = vunpack.c.l.b16 %v282
    %v580 = vunpack.c.h.b16 %v282
    %v581 = vunpack.c.l.b16 %v283
    %v582 = vunpack.c.h.b16 %v283
    %v583 = vunpack.c.l.b16 %v284
    %v584 = vunpack.c.h.b16 %v284
    %v585 = vunpack.c.l.b16 %v285
    %v586 = vunpack.c.h.b16 %v285
    %v587 = vunpack.c.l.b16 %v286
    %v588 = vunpack.c.h.b16 %v286
    %v589 = vunpack.c.l.b16 %v287
    %v590 = vunpack.c.h.b16 %v287
    %v591 = vunpack.c.l.b16 %v288
    %v592 = vunpack.c.h.b16 %v288
    %v593 = vunpack.c.l.b16 %v289
    %v594 = vunpack.c.h.b16 %v289
    %v595 = vunpack.c.l.b16 %v290
    %v596 = vunpack.c.h.b16 %v290
    %v597 = vunpack.c.l.b16 %v291
    %v598 = vunpack.c.h.b16 %v291
    %v599 = vunpack.c.l.b16 %v292
    %v600 = vunpack.c.h.b16 %v292
    %v601 = vunpack.c.l.b16 %v293
    %v602 = vunpack.c.h.b16 %v293
    %v603 = vunpack.c.l.b16 %v294
    %v604 = vunpack.c.h.b16 %v294
    %v605 = vunpack.c.l.b16 %v295
    %v606 = vunpack.c.h.b16 %v295
    %v607 = vunpack.c.l.b16 %v296
    %v608 = vunpack.c.h.b16 %v296
    %v609 = vunpack.c.l.b16 %v297
    %v610 = vunpack.c.h.b16 %v297
    %v611 = vunpack.c.l.b16 %v298
    %v612 = vunpack.c.h.b16 %v298
    %v613 = vunpack.c.l.b16 %v299
    %v614 = vunpack.c.h.b16 %v299
    %v615 = vunpack.c.l.b16 %v300
    %v616 = vunpack.c.h.b16 %v300
    %v617 = vunpack.c.l.b16 %v301
    %v618 = vunpack.c.h.b16 %v301
    %v619 = vunpack.c.l.b16 %v302
    %v620 = vunpack.c.h.b16 %v302
    %v621 = vunpack.c.l.b16 %v303
    %v622 = vunpack.c.h.b16 %v303
    %v623 = vunpack.c.l.b16 %v304
    %v624 = vunpack.c.h.b16 %v304
    %v625 = vunpack.c.l.b16 %v305
    %v626 = vunpack.c.h.b16 %v305
    %v627 = vunpack.c.l.b16 %v306
    %v628 = vunpack.c.h.b16 %v306
    %v629 = vunpack.c.l.b16 %v307
    %v630 = vunpack.c.h.b16 %v307
    %v631 = vunpack.c.l.b16 %v308
    %v632 = vunpack.c.h.b16 %v308
    %v633 = vunpack.c.l.b16 %v309
    %v634 = vunpack.c.h.b16 %v309
    %v635 = vunpack.c.l.b16 %v310
    %v636 = vunpack.c.h.b16 %v310
    %v637 = vunpack.c.l.b16 %v311
    %v638 = vunpack.c.h.b16 %v311
    %v639 = vunpack.c.l.b16 %v312
    %v640 = vunpack.c.h.b16 %v312
    %v641 = vunpack.c.l.b16 %v313
    %v642 = vunpack.c.h.b16 %v313
    %v643 = vunpack.c.l.b16 %v314
    %v644 = vunpack.c.h.b16 %v314
    %v645 = vunpack.c.l.b16 %v315
    %v646 = vunpack.c.h.b16 %v315
    %v647 = vunpack.c.l.b16 %v316
    %v648 = vunpack.c.h.b16 %v316
    %v649 = vunpack.c.l.b16 %v317
    %v650 = vunpack.c.h.b16 %v317
    %v651 = vunpack.c.l.b16 %v318
    %v652 = vunpack.c.h.b16 %v318
    %v653 = vunpack.c.l.b16 %v319
    %v654 = vunpack.c.h.b16 %v319
    %v655 = vunpack.c.l.b16 %v320
    %v656 = vunpack.c.h.b16 %v320
    %v657 = vunpack.c.l.b16 %v321
    %v658 = vunpack.c.h.b16 %v321
    %v659 = vunpack.c.l.b16 %v322
    %v660 = vunpack.c.h.b16 %v322
    %v661 = vunpack.c.l.b16 %v323
    %v662 = vunpack.c.h.b16 %v323
    %v663 = vunpack.c.l.b16 %v324
    %v664 = vunpack.c.h.b16 %v324
    %v665 = vunpack.c.l.b16 %v325
    %v666 = vunpack.c.h.b16 %v325
    %v667 = vunpack.c.l.b16 %v326
    %v668 = vunpack.c.h.b16 %v326
    %v669 = vunpack.c.l.b16 %v327
    %v670 = vunpack.c.h.b16 %v327
    %v671 = vunpack.c.l.b16 %v328
    %v672 = vunpack.c.h.b16 %v328
    %v673 = vunpack.c.l.b16 %v329
    %v674 = vunpack.c.h.b16 %v329
    %v675 = vunpack.c.l.b16 %v330
    %v676 = vunpack.c.h.b16 %v330
    %v677 = vunpack.c.l.b16 %v331
    %v678 = vunpack.c.h.b16 %v331
    %v679 = vunpack.c.l.b16 %v332
    %v680 = vunpack.c.h.b16 %v332
    %v681 = vunpack.c.l.b16 %v333
    %v682 = vunpack.c.h.b16 %v333
    %v683 = vunpack.c.l.b16 %v334
    %v684 = vunpack.c.h.b16 %v334
    %v685 = vunpack.c.l.b16 %v335
    %v686 = vunpack.c.h.b16 %v335
    %v687 = vunpack.c.l.b16 %v336
    %v688 = vunpack.c.h.b16 %v336
    %v689 = vunpack.c.l.b16 %v337
    %v690 = vunpack.c.h.b16 %v337
    %v691 = vunpack.c.l.b16 %v338
    %v692 = vunpack.c.h.b16 %v338
    %v693 = vunpack.c.l.b16 %v339
    %v694 = vunpack.c.h.b16 %v339
    %v695 = vunpack.c.l.b16 %v340
    %v696 = vunpack.c.h.b16 %v340
    %v697 = vunpack.c.l.b16 %v341
    %v698 = vunpack.c.h.b16 %v341
    %v699 = vunpack.c.l.b16 %v342
    %v700 = vunpack.c.h.b16 %v342
    %v701 = vunpack.c.l.b16 %v343
    %v702 = vunpack.c.h.b16 %v343
    %v703 = vunpack.c.l.b16 %v344
    %v704 = vunpack.c.h.b16 %v344
    %v705 = vunpack.c.l.b16 %v345
    %v706 = vunpack.c.h.b16 %v345
    %v707 = vunpack.c.l.b16 %v346
    %v708 = vunpack.c.h.b16 %v346
    %v709 = vunpack.c.l.b16 %v347
    %v710 = vunpack.c.h.b16 %v347
    %v711 = vunpack.c.l.b16 %v348
    %v712 = vunpack.c.h.b16 %v348
    %v713 = vunpack.c.l.b16 %v349
    %v714 = vunpack.c.h.b16 %v349
    %v715 = vunpack.c.l.b16 %v350
    %v716 = vunpack.c.h.b16 %v350
    %v717 = vunpack.c.l.b16 %v351
    %v718 = vunpack.c.h.b16 %v351
    %v719 = vunpack.c.l.b16 %v352
    %v720 = vunpack.c.h.b16 %v352
    %v721 = vunpack.c.l.b16 %v353
    %v722 = vunpack.c.h.b16 %v353
    %v723 = vunpack.c.l.b16 %v354
    %v724 = vunpack.c.h.b16 %v354
    %v725 = vunpack.c.l.b16 %v355
    %v726 = vunpack.c.h.b16 %v355
    %v727 = vunpack.c.l.b16 %v356
    %v728 = vunpack.c.h.b16 %v356
    %v729 = vunpack.c.l.b16 %v357
    %v730 = vunpack.c.h.b16 %v357
    %v731 = vunpack.c.l.b16 %v358
    %v732 = vunpack.c.h.b16 %v358
    %v733 = vunpack.c.l.b16 %v359
    %v734 = vunpack.c.h.b16 %v359
    %v735 = vunpack.c.l.b16 %v360
    %v736 = vunpack.c.h.b16 %v360
    %v737 = vunpack.c.l.b16 %v361
    %v738 = vunpack.c.h.b16 %v361
    %v739 = vunpack.c.l.b16 %v362
    %v740 = vunpack.c.h.b16 %v362
    %v741 = vunpack.c.l.b16 %v363
    %v742 = vunpack.c.h.b16 %v363
    %v743 = vunpack.c.l.b16 %v364
    %v744 = vunpack.c.h.b16 %v364
    %v745 = vunpack.c.l.b16 %v365
    %v746 = vunpack.c.h.b16 %v365
    %v747 = vunpack.c.l.b16 %v366
    %v748 = vunpack.c.h.b16 %v366
    %v749 = vunpack.c.l.b16 %v367
    %v750 = vunpack.c.h.b16 %v367
    %v751 = vunpack.c.l.b16 %v368
    %v752 = vunpack.c.h.b16 %v368
    %v753 = vunpack.c.l.b16 %v369
    %v754 = vunpack.c.h.b16 %v369
    %v755 = vunpack.c.l.b16 %v370
    %v756 = vunpack.c.h.b16 %v370
    %v757 = vunpack.c.l.b16 %v371
    %v758 = vunpack.c.h.b16 %v371
    %v759 = vunpack.c.l.b16 %v372
    %v760 = vunpack.c.h.b16 %v372
    %v761 = vunpack.c.l.b16 %v373
    %v762 = vunpack.c.h.b16 %v373
    %v763 = vunpack.c.l.b16 %v374
    %v764 = vunpack.c.h.b16 %v374
    %v765 = vunpack.c.l.b16 %v375
    %v766 = vunpack.c.h.b16 %v375
    %v767 = vunpack.c.l.b16 %v376
    %v768 = vunpack.c.h.b16 %v376
    %v769 = vunpack.c.l.b16 %v377
    %v770 = vunpack.c.h.b16 %v377
    %v771 = vunpack.c.l.b16 %v378
    %v772 = vunpack.c.h.b16 %v378
    %v773 = vunpack.c.l.b16 %v379
    %v774 = vunpack.c.h.b16 %v379
    %v775 = vunpack.c.l.b16 %v380
    %v776 = vunpack.c.h.b16 %v380
    %v777 = vunpack.c.l.b16 %v381
    %v778 = vunpack.c.h.b16 %v381
    %v779 = vunpack.c.l.b16 %v382
    %v780 = vunpack.c.h.b16 %v382
    %v781 = vunpack.c.l.b16 %v383
    %v782 = vunpack.c.h.b16 %v383
    %v783 = vunpack.c.l.b16 %v384
    %v784 = vunpack.c.h.b16 %v384
    %v785 = vunpack.c.l.b16 %v385
    %v786 = vunpack.c.h.b16 %v385
    %v787 = vunpack.c.l.b16 %v386
    %v788 = vunpack.c.h.b16 %v386
    %v789 = vunpack.c.l.b16 %v387
    %v790 = vunpack.c.h.b16 %v387
    %v791 = vunpack.c.l.b16 %v388
    %v792 = vunpack.c.h.b16 %v388
    %v793 = vunpack.c.l.b16 %v389
    %v794 = vunpack.c.h.b16 %v389
    %v795 = vunpack.c.l.b16 %v390
    %v796 = vunpack.c.h.b16 %v390
    %v797 = vunpack.c.l.b16 %v391
    %v798 = vunpack.c.h.b16 %v391
    %v799 = vunpack.c.l.b16 %v392
    %v800 = vunpack.c.h.b16 %v392
    %v801 = vunpack.c.l.b16 %v393
    %v802 = vunpack.c.h.b16 %v393
    %v803 = vunpack.c.l.b16 %v394
    %v804 = vunpack.c.h.b16 %v394
    %v805 = vpack.c.b16 %v553, %v549
    %v806 = vpack.c.b16 %v554, %v550
    %v807 = vpack.c.b16 %v555, %v551
    %v808 = vpack.c.b16 %v556, %v552
    %v809 = vpack.c.b16 %v561, %v557
    %v810 = vpack.c.b16 %v562, %v558
    %v811 = vpack.c.b16 %v563, %v559
    %v812 = vpack.c.b16 %v564, %v560
    %v813 = vpack.c.b16 %v569, %v565
    %v814 = vpack.c.b16 %v570, %v566
    %v815 = vpack.c.b16 %v571, %v567
    %v816 = vpack.c.b16 %v572, %v568
    %v817 = vpack.c.b16 %v577, %v573
    %v818 = vpack.c.b16 %v578, %v574
    %v819 = vpack.c.b16 %v579, %v575
    %v820 = vpack.c.b16 %v580, %v576
    %v821 = vpack.c.b16 %v585, %v581
    %v822 = vpack.c.b16 %v586, %v582
    %v823 = vpack.c.b16 %v587, %v583
    %v824 = vpack.c.b16 %v588, %v584
    %v825 = vpack.c.b16 %v593, %v589
    %v826 = vpack.c.b16 %v594, %v590
    %v827 = vpack.c.b16 %v595, %v591
    %v828 = vpack.c.b16 %v596, %v592
    %v829 = vpack.c.b16 %v601, %v597
    %v830 = vpack.c.b16 %v602, %v598
    %v831 = vpack.c.b16 %v603, %v599
    %v832 = vpack.c.b16 %v604, %v600
    %v833 = vpack.c.b16 %v609, %v605
    %v834 = vpack.c.b16 %v610, %v606
    %v835 = vpack.c.b16 %v611, %v607
    %v836 = vpack.c.b16 %v612, %v608
    %v837 = vpack.c.b16 %v617, %v613
    %v838 = vpack.c.b16 %v618, %v614
    %v839 = vpack.c.b16 %v619, %v615
    %v840 = vpack.c.b16 %v620, %v616
    %v841 = vpack.c.b16 %v625, %v621
    %v842 = vpack.c.b16 %v626, %v622
    %v843 = vpack.c.b16 %v627, %v623
    %v844 = vpack.c.b16 %v628, %v624
    %v845 = vpack.c.b16 %v633, %v629
    %v846 = vpack.c.b16 %v634, %v630
    %v847 = vpack.c.b16 %v635, %v631
    %v848 = vpack.c.b16 %v636, %v632
    %v849 = vpack.c.b16 %v641, %v637
    %v850 = vpack.c.b16 %v642, %v638
    %v851 = vpack.c.b16 %v643, %v639
    %v852 = vpack.c.b16 %v644, %v640
    %v853 = vpack.c.b16 %v649, %v645
    %v854 = vpack.c.b16 %v650, %v646
    %v855 = vpack.c.b16 %v651, %v647
    %v856 = vpack.c.b16 %v652, %v648
    %v857 = vpack.c.b16 %v657, %v653
    %v858 = vpack.c.b16 %v658, %v654
    %v859 = vpack.c.b16 %v659, %v655
    %v860 = vpack.c.b16 %v660, %v656
    %v861 = vpack.c.b16 %v665, %v661
    %v862 = vpack.c.b16 %v666, %v662
    %v863 = vpack.c.b16 %v667, %v663
    %v864 = vpack.c.b16 %v668, %v664
    %v865 = vpack.c.b16 %v673, %v669
    %v866 = vpack.c.b16 %v674, %v670
    %v867 = vpack.c.b16 %v675, %v671
    %v868 = vpack.c.b16 %v676, %v672
    %v869 = vpack.c.b16 %v681, %v677
    %v870 = vpack.c.b16 %v682, %v678
    %v871 = vpack.c.b16 %v683, %v679
    %v872 = vpack.c.b16 %v684, %v680
    %v873 = vpack.c.b16 %v689, %v685
    %v874 = vpack.c.b16 %v690, %v686
    %v875 = vpack.c.b16 %v691, %v687
    %v876 = vpack.c.b16 %v692, %v688
    %v877 = vpack.c.b16 %v697, %v693
    %v878 = vpack.c.b16 %v698, %v694
    %v879 = vpack.c.b16 %v699, %v695
    %v880 = vpack.c.b16 %v700, %v696
    %v881 = vpack.c.b16 %v705, %v701
    %v882 = vpack.c.b16 %v706, %v702
    %v883 = vpack.c.b16 %v707, %v703
    %v884 = vpack.c.b16 %v708, %v704
    %v885 = vpack.c.b16 %v713, %v709
    %v886 = vpack.c.b16 %v714, %v710
    %v887 = vpack.c.b16 %v715, %v711
    %v888 = vpack.c.b16 %v716, %v712
    %v889 = vpack.c.b16 %v721, %v717
    %v890 = vpack.c.b16 %v722, %v718
    %v891 = vpack.c.b16 %v723, %v719
    %v892 = vpack.c.b16 %v724, %v720
    %v893 = vpack.c.b16 %v729, %v725
    %v894 = vpack.c.b16 %v730, %v726
    %v895 = vpack.c.b16 %v731, %v727
    %v896 = vpack.c.b16 %v732, %v728
    %v897 = vpack.c.b16 %v737, %v733
    %v898 = vpack.c.b16 %v738, %v734
    %v899 = vpack.c.b16 %v739, %v735
    %v900 = vpack.c.b16 %v740, %v736
    %v901 = vpack.c.b16 %v745, %v741
    %v902 = vpack.c.b16 %v746, %v742
    %v903 = vpack.c.b16 %v747, %v743
    %v904 = vpack.c.b16 %v748, %v744
    %v905 = vpack.c.b16 %v753, %v749
    %v906 = vpack.c.b16 %v754, %v750
    %v907 = vpack.c.b16 %v755, %v751
    %v908 = vpack.c.b16 %v756, %v752
    %v909 = vpack.c.b16 %v761, %v757
    %v910 = vpack.c.b16 %v762, %v758
    %v911 = vpack.c.b16 %v763, %v759
    %v912 = vpack.c.b16 %v764, %v760
    %v913 = vpack.c.b16 %v769, %v765
    %v914 = vpack.c.b16 %v770, %v766
    %v915 = vpack.c.b16 %v771, %v767
    %v916 = vpack.c.b16 %v772, %v768
    %v917 = vpack.c.b16 %v777, %v773
    %v918 = vpack.c.b16 %v778, %v774
    %v919 = vpack.c.b16 %v779, %v775
    %v920 = vpack.c.b16 %v780, %v776
    %v921 = vpack.c.b16 %v785, %v781
    %v922 = vpack.c.b16 %v786, %v782
    %v923 = vpack.c.b16 %v787, %v783
    %v924 = vpack.c.b16 %v788, %v784
    %v925 = vpack.c.b16 %v793, %v789
    %v926 = vpack.c.b16 %v794, %v790
    %v927 = vpack.c.b16 %v795, %v791
    %v928 = vpack.c.b16 %v796, %v792
    %v929 = vpack.c.b16 %v801, %v797
    %v930 = vpack.c.b16 %v802, %v798
    %v931 = vpack.c.b16 %v803, %v799
    %v932 = vpack.c.b16 %v804, %v800
    %1061 = vmatprep.subr.bf16.mxu0 %v806
    %1062 = vmatpush1.bf16.msra.mxu0 %v805
    %1063 = vmatprep.subr.bf16.mxu0 %v810
    %1064 = vmatpush1.bf16.msra.mxu0 %v809
    %1065 = vmatprep.subr.bf16.mxu0 %v814
    %1066 = vmatpush1.bf16.msra.mxu0 %v813
    %1067 = vmatprep.subr.bf16.mxu0 %v818
    %1068 = vmatpush1.bf16.msra.mxu0 %v817
    %1069 = vmatprep.subr.bf16.mxu0 %v822
    %1070 = vmatpush1.bf16.msra.mxu0 %v821
    %1071 = vmatprep.subr.bf16.mxu0 %v826
    %1072 = vmatpush1.bf16.msra.mxu0 %v825
    %1073 = vmatprep.subr.bf16.mxu0 %v830
    %1074 = vmatpush1.bf16.msra.mxu0 %v829
    %1075 = vmatprep.subr.bf16.mxu0 %v834
    %1076 = vmatpush1.bf16.msra.mxu0 %v833
    %1077 = vmatprep.subr.bf16.mxu0 %v838
    %1078 = vmatpush1.bf16.msra.mxu0 %v837
    %1079 = vmatprep.subr.bf16.mxu0 %v842
    %1080 = vmatpush1.bf16.msra.mxu0 %v841
    %1081 = vmatprep.subr.bf16.mxu0 %v846
    %1082 = vmatpush1.bf16.msra.mxu0 %v845
    %1083 = vmatprep.subr.bf16.mxu0 %v850
    %1084 = vmatpush1.bf16.msra.mxu0 %v849
    %1085 = vmatprep.subr.bf16.mxu0 %v854
    %1086 = vmatpush1.bf16.msra.mxu0 %v853
    %1087 = vmatprep.subr.bf16.mxu0 %v858
    %1088 = vmatpush1.bf16.msra.mxu0 %v857
    %1089 = vmatprep.subr.bf16.mxu0 %v862
    %1090 = vmatpush1.bf16.msra.mxu0 %v861
    %1091 = vmatprep.subr.bf16.mxu0 %v866
    %1092 = vmatpush1.bf16.msra.mxu0 %v865
    %1093 = vmatprep.mubr.bf16.mxu0 %v396
    %1094 = vmatmul.mubr.bf16.gmra.mrb[0].mxu0 %v395
    %v1095 = vpop.f32.mrb[0].mxu0
    %v1096 = vadd.f32 %v404, %v1095
    %v1097 = vpop.f32.mrb[0].mxu0
    %v1098 = vadd.f32 %v408, %v1097
    %v1099 = vpop.f32.mrb[0].mxu0
    %v1100 = vpop.f32.mrb[0].mxu0
    %1101 = vdwg.mxu0
    %1102 = vmatprep.subr.bf16.mxu0 %v870
    %1103 = vmatpush1.bf16.msra.mxu0 %v869
    %1104 = vmatprep.subr.bf16.mxu0 %v874
    %1105 = vmatpush1.bf16.msra.mxu0 %v873
    %1106 = vmatprep.subr.bf16.mxu0 %v878
    %1107 = vmatpush1.bf16.msra.mxu0 %v877
    %1108 = vmatprep.subr.bf16.mxu0 %v882
    %1109 = vmatpush1.bf16.msra.mxu0 %v881
    %1110 = vmatprep.subr.bf16.mxu0 %v886
    %1111 = vmatpush1.bf16.msra.mxu0 %v885
    %1112 = vmatprep.subr.bf16.mxu0 %v890
    %1113 = vmatpush1.bf16.msra.mxu0 %v889
    %1114 = vmatprep.subr.bf16.mxu0 %v894
    %1115 = vmatpush1.bf16.msra.mxu0 %v893
    %1116 = vmatprep.subr.bf16.mxu0 %v898
    %1117 = vmatpush1.bf16.msra.mxu0 %v897
    %1118 = vmatprep.subr.bf16.mxu0 %v902
    %1119 = vmatpush1.bf16.msra.mxu0 %v901
    %1120 = vmatprep.subr.bf16.mxu0 %v906
    %1121 = vmatpush1.bf16.msra.mxu0 %v905
    %1122 = vmatprep.subr.bf16.mxu0 %v910
    %1123 = vmatpush1.bf16.msra.mxu0 %v909
    %1124 = vmatprep.subr.bf16.mxu0 %v914
    %1125 = vmatpush1.bf16.msra.mxu0 %v913
    %1126 = vmatprep.subr.bf16.mxu0 %v918
    %1127 = vmatpush1.bf16.msra.mxu0 %v917
    %1128 = vmatprep.subr.bf16.mxu0 %v922
    %1129 = vmatpush1.bf16.msra.mxu0 %v921
    %1130 = vmatprep.subr.bf16.mxu0 %v926
    %1131 = vmatpush1.bf16.msra.mxu0 %v925
    %1132 = vmatprep.subr.bf16.mxu0 %v930
    %1133 = vmatpush1.bf16.msra.mxu0 %v929
    %1134 = vmatprep.mubr.bf16.mxu0 %v398
    %1135 = vmatmul.mubr.bf16.gmra.mrb[0].mxu0 %v397
    %v1136 = vpop.f32.mrb[0].mxu0
    %v1137 = vadd.f32 %v1096, %v1136
    %v1138 = vpop.f32.mrb[0].mxu0
    %v1139 = vadd.f32 %v1098, %v1138
    %v1140 = vpop.f32.mrb[0].mxu0
    %v1141 = vpop.f32.mrb[0].mxu0
    %1142 = vdwg.mxu0
    %1143 = vmatprep.subr.bf16.mxu0 %v808
    %1144 = vmatpush1.bf16.msra.mxu0 %v807
    %1145 = vmatprep.subr.bf16.mxu0 %v812
    %1146 = vmatpush1.bf16.msra.mxu0 %v811
    %1147 = vmatprep.subr.bf16.mxu0 %v816
    %1148 = vmatpush1.bf16.msra.mxu0 %v815
    %1149 = vmatprep.subr.bf16.mxu0 %v820
    %1150 = vmatpush1.bf16.msra.mxu0 %v819
    %1151 = vmatprep.subr.bf16.mxu0 %v824
    %1152 = vmatpush1.bf16.msra.mxu0 %v823
    %1153 = vmatprep.subr.bf16.mxu0 %v828
    %1154 = vmatpush1.bf16.msra.mxu0 %v827
    %1155 = vmatprep.subr.bf16.mxu0 %v832
    %1156 = vmatpush1.bf16.msra.mxu0 %v831
    %1157 = vmatprep.subr.bf16.mxu0 %v836
    %1158 = vmatpush1.bf16.msra.mxu0 %v835
    %1159 = vmatprep.subr.bf16.mxu0 %v840
    %1160 = vmatpush1.bf16.msra.mxu0 %v839
    %1161 = vmatprep.subr.bf16.mxu0 %v844
    %1162 = vmatpush1.bf16.msra.mxu0 %v843
    %1163 = vmatprep.subr.bf16.mxu0 %v848
    %1164 = vmatpush1.bf16.msra.mxu0 %v847
    %1165 = vmatprep.subr.bf16.mxu0 %v852
    %1166 = vmatpush1.bf16.msra.mxu0 %v851
    %1167 = vmatprep.subr.bf16.mxu0 %v856
    %1168 = vmatpush1.bf16.msra.mxu0 %v855
    %1169 = vmatprep.subr.bf16.mxu0 %v860
    %1170 = vmatpush1.bf16.msra.mxu0 %v859
    %1171 = vmatprep.subr.bf16.mxu0 %v864
    %1172 = vmatpush1.bf16.msra.mxu0 %v863
    %1173 = vmatprep.subr.bf16.mxu0 %v868
    %1174 = vmatpush1.bf16.msra.mxu0 %v867
    %1175 = vmatprep.mubr.bf16.mxu0 %v396
    %1176 = vmatmul.mubr.bf16.gmra.mrb[0].mxu0 %v395
    %v1177 = vpop.f32.mrb[0].mxu0
    %v1178 = vadd.f32 %v412, %v1177
    %v1179 = vpop.f32.mrb[0].mxu0
    %v1180 = vadd.f32 %v416, %v1179
    %v1181 = vpop.f32.mrb[0].mxu0
    %v1182 = vpop.f32.mrb[0].mxu0
    %1183 = vdwg.mxu0
    %1184 = vmatprep.subr.bf16.mxu0 %v872
    %1185 = vmatpush1.bf16.msra.mxu0 %v871
    %1186 = vmatprep.subr.bf16.mxu0 %v876
    %1187 = vmatpush1.bf16.msra.mxu0 %v875
    %1188 = vmatprep.subr.bf16.mxu0 %v880
    %1189 = vmatpush1.bf16.msra.mxu0 %v879
    %1190 = vmatprep.subr.bf16.mxu0 %v884
    %1191 = vmatpush1.bf16.msra.mxu0 %v883
    %1192 = vmatprep.subr.bf16.mxu0 %v888
    %1193 = vmatpush1.bf16.msra.mxu0 %v887
    %1194 = vmatprep.subr.bf16.mxu0 %v892
    %1195 = vmatpush1.bf16.msra.mxu0 %v891
    %1196 = vmatprep.subr.bf16.mxu0 %v896
    %1197 = vmatpush1.bf16.msra.mxu0 %v895
    %1198 = vmatprep.subr.bf16.mxu0 %v900
    %1199 = vmatpush1.bf16.msra.mxu0 %v899
    %1200 = vmatprep.subr.bf16.mxu0 %v904
    %1201 = vmatpush1.bf16.msra.mxu0 %v903
    %1202 = vmatprep.subr.bf16.mxu0 %v908
    %1203 = vmatpush1.bf16.msra.mxu0 %v907
    %1204 = vmatprep.subr.bf16.mxu0 %v912
    %1205 = vmatpush1.bf16.msra.mxu0 %v911
    %1206 = vmatprep.subr.bf16.mxu0 %v916
    %1207 = vmatpush1.bf16.msra.mxu0 %v915
    %1208 = vmatprep.subr.bf16.mxu0 %v920
    %1209 = vmatpush1.bf16.msra.mxu0 %v919
    %1210 = vmatprep.subr.bf16.mxu0 %v924
    %1211 = vmatpush1.bf16.msra.mxu0 %v923
    %1212 = vmatprep.subr.bf16.mxu0 %v928
    %1213 = vmatpush1.bf16.msra.mxu0 %v927
    %1214 = vmatprep.subr.bf16.mxu0 %v932
    %1215 = vmatpush1.bf16.msra.mxu0 %v931
    %1216 = vmatprep.mubr.bf16.mxu0 %v398
    %1217 = vmatmul.mubr.bf16.gmra.mrb[0].mxu0 %v397
    %v1218 = vpop.f32.mrb[0].mxu0
    %v1219 = vadd.f32 %v1178, %v1218
    %v1220 = vpop.f32.mrb[0].mxu0
    %v1221 = vadd.f32 %v1180, %v1220
    %v1222 = vpop.f32.mrb[0].mxu0
    %v1223 = vpop.f32.mrb[0].mxu0
    %1224 = vdwg.mxu0
    %v1225 = vmax.f32 %v1137, 0.0
    %v1226 = vmax.f32 %v1139, 0.0
    %v1227 = vmax.f32 %v1219, 0.0
    %v1228 = vmax.f32 %v1221, 0.0
    %v1229 = vld [vmem:[%s5] sm:$0xf]
    %v1230 = vld [vmem:[%s5 + $0x4] sm:$0xf]
    %v1231 = vld [vmem:[%s5 + $0x8] sm:$0xf]
    %v1232 = vld [vmem:[%s5 + $0xc] sm:$0xf]
    %v1233 = vld [vmem:[%s5 + $0x10] sm:$0xf]
    %v1234 = vld [vmem:[%s5 + $0x14] sm:$0xf]
    %v1235 = vld [vmem:[%s5 + $0x18] sm:$0xf]
    %v1236 = vld [vmem:[%s5 + $0x1c] sm:$0xf]
    %v1237 = vld [vmem:[%s5 + $0x20] sm:$0xf]
    %v1238 = vld [vmem:[%s5 + $0x24] sm:$0xf]
    %v1239 = vld [vmem:[%s5 + $0x28] sm:$0xf]
    %v1240 = vld [vmem:[%s5 + $0x2c] sm:$0xf]
    %v1241 = vld [vmem:[%s5 + $0x30] sm:$0xf]
    %v1242 = vld [vmem:[%s5 + $0x34] sm:$0xf]
    %v1243 = vld [vmem:[%s5 + $0x38] sm:$0xf]
    %v1244 = vld [vmem:[%s5 + $0x3c] sm:$0xf]
    %v1245 = vld [vmem:[%s5 + $0x40] sm:$0xf]
    %v1246 = vld [vmem:[%s5 + $0x44] sm:$0xf]
    %v1247 = vld [vmem:[%s5 + $0x48] sm:$0xf]
    %v1248 = vld [vmem:[%s5 + $0x4c] sm:$0xf]
    %v1249 = vld [vmem:[%s5 + $0x50] sm:$0xf]
    %v1250 = vld [vmem:[%s5 + $0x54] sm:$0xf]
    %v1251 = vld [vmem:[%s5 + $0x58] sm:$0xf]
    %v1252 = vld [vmem:[%s5 + $0x5c] sm:$0xf]
    %v1253 = vld [vmem:[%s5 + $0x60] sm:$0xf]
    %v1254 = vld [vmem:[%s5 + $0x64] sm:$0xf]
    %v1255 = vld [vmem:[%s5 + $0x68] sm:$0xf]
    %v1256 = vld [vmem:[%s5 + $0x6c] sm:$0xf]
    %v1257 = vld [vmem:[%s5 + $0x70] sm:$0xf]
    %v1258 = vld [vmem:[%s5 + $0x74] sm:$0xf]
    %v1259 = vld [vmem:[%s5 + $0x78] sm:$0xf]
    %v1260 = vld [vmem:[%s5 + $0x7c] sm:$0xf]
    %v1261 = vld [vmem:[%s5 + $0x80] sm:$0xf]
    %v1262 = vld [vmem:[%s5 + $0x84] sm:$0xf]
    %v1263 = vld [vmem:[%s5 + $0x88] sm:$0xf]
    %v1264 = vld [vmem:[%s5 + $0x8c] sm:$0xf]
    %v1265 = vld [vmem:[%s5 + $0x90] sm:$0xf]
    %v1266 = vld [vmem:[%s5 + $0x94] sm:$0xf]
    %v1267 = vld [vmem:[%s5 + $0x98] sm:$0xf]
    %v1268 = vld [vmem:[%s5 + $0x9c] sm:$0xf]
    %v1269 = vld [vmem:[%s5 + $0xa0] sm:$0xf]
    %v1270 = vld [vmem:[%s5 + $0xa4] sm:$0xf]
    %v1271 = vld [vmem:[%s5 + $0xa8] sm:$0xf]
    %v1272 = vld [vmem:[%s5 + $0xac] sm:$0xf]
    %v1273 = vld [vmem:[%s5 + $0xb0] sm:$0xf]
    %v1274 = vld [vmem:[%s5 + $0xb4] sm:$0xf]
    %v1275 = vld [vmem:[%s5 + $0xb8] sm:$0xf]
    %v1276 = vld [vmem:[%s5 + $0xbc] sm:$0xf]
    %v1277 = vld [vmem:[%s5 + $0xc0] sm:$0xf]
    %v1278 = vld [vmem:[%s5 + $0xc4] sm:$0xf]
    %v1279 = vld [vmem:[%s5 + $0xc8] sm:$0xf]
    %v1280 = vld [vmem:[%s5 + $0xcc] sm:$0xf]
    %v1281 = vld [vmem:[%s5 + $0xd0] sm:$0xf]
    %v1282 = vld [vmem:[%s5 + $0xd4] sm:$0xf]
    %v1283 = vld [vmem:[%s5 + $0xd8] sm:$0xf]
    %v1284 = vld [vmem:[%s5 + $0xdc] sm:$0xf]
    %v1285 = vld [vmem:[%s5 + $0xe0] sm:$0xf]
    %v1286 = vld [vmem:[%s5 + $0xe4] sm:$0xf]
    %v1287 = vld [vmem:[%s5 + $0xe8] sm:$0xf]
    %v1288 = vld [vmem:[%s5 + $0xec] sm:$0xf]
    %v1289 = vld [vmem:[%s5 + $0xf0] sm:$0xf]
    %v1290 = vld [vmem:[%s5 + $0xf4] sm:$0xf]
    %v1291 = vld [vmem:[%s5 + $0xf8] sm:$0xf]
    %v1292 = vld [vmem:[%s5 + $0xfc] sm:$0xf]
    %v1293 = vpack.c.bf16 %v1225, %v1225
    %v1294 = vpack.c.bf16 %v1226, %v1226
    %v1295 = vpack.c.bf16 %v1227, %v1227
    %v1296 = vpack.c.bf16 %v1228, %v1228
    %v1297 = vld [vmem:[%s6] sm:$0x1]
    %v1299 = vlaneseq
    %v1300 = vshrl.u32 %v1299, 7
    %v1301 = vsub.s32 0, %v1300
    %v1302 = vrot.slane %v1297, %v1301
    %v1368 = vunpack.c.l.b16 %v1229
    %v1369 = vunpack.c.l.b16 %v1230
    %v1370 = vunpack.c.l.b16 %v1231
    %v1371 = vunpack.c.l.b16 %v1232
    %v1372 = vunpack.c.l.b16 %v1233
    %v1373 = vunpack.c.l.b16 %v1234
    %v1374 = vunpack.c.l.b16 %v1235
    %v1375 = vunpack.c.l.b16 %v1236
    %v1376 = vunpack.c.l.b16 %v1237
    %v1377 = vunpack.c.l.b16 %v1238
    %v1378 = vunpack.c.l.b16 %v1239
    %v1379 = vunpack.c.l.b16 %v1240
    %v1380 = vunpack.c.l.b16 %v1241
    %v1381 = vunpack.c.l.b16 %v1242
    %v1382 = vunpack.c.l.b16 %v1243
    %v1383 = vunpack.c.l.b16 %v1244
    %v1384 = vunpack.c.l.b16 %v1245
    %v1385 = vunpack.c.l.b16 %v1246
    %v1386 = vunpack.c.l.b16 %v1247
    %v1387 = vunpack.c.l.b16 %v1248
    %v1388 = vunpack.c.l.b16 %v1249
    %v1389 = vunpack.c.l.b16 %v1250
    %v1390 = vunpack.c.l.b16 %v1251
    %v1391 = vunpack.c.l.b16 %v1252
    %v1392 = vunpack.c.l.b16 %v1253
    %v1393 = vunpack.c.l.b16 %v1254
    %v1394 = vunpack.c.l.b16 %v1255
    %v1395 = vunpack.c.l.b16 %v1256
    %v1396 = vunpack.c.l.b16 %v1257
    %v1397 = vunpack.c.l.b16 %v1258
    %v1398 = vunpack.c.l.b16 %v1259
    %v1399 = vunpack.c.l.b16 %v1260
    %v1400 = vunpack.c.l.b16 %v1261
    %v1401 = vunpack.c.l.b16 %v1262
    %v1402 = vunpack.c.l.b16 %v1263
    %v1403 = vunpack.c.l.b16 %v1264
    %v1404 = vunpack.c.l.b16 %v1265
    %v1405 = vunpack.c.l.b16 %v1266
    %v1406 = vunpack.c.l.b16 %v1267
    %v1407 = vunpack.c.l.b16 %v1268
    %v1408 = vunpack.c.l.b16 %v1269
    %v1409 = vunpack.c.l.b16 %v1270
    %v1410 = vunpack.c.l.b16 %v1271
    %v1411 = vunpack.c.l.b16 %v1272
    %v1412 = vunpack.c.l.b16 %v1273
    %v1413 = vunpack.c.l.b16 %v1274
    %v1414 = vunpack.c.l.b16 %v1275
    %v1415 = vunpack.c.l.b16 %v1276
    %v1416 = vunpack.c.l.b16 %v1277
    %v1417 = vunpack.c.l.b16 %v1278
    %v1418 = vunpack.c.l.b16 %v1279
    %v1419 = vunpack.c.l.b16 %v1280
    %v1420 = vunpack.c.l.b16 %v1281
    %v1421 = vunpack.c.l.b16 %v1282
    %v1422 = vunpack.c.l.b16 %v1283
    %v1423 = vunpack.c.l.b16 %v1284
    %v1424 = vunpack.c.l.b16 %v1285
    %v1425 = vunpack.c.l.b16 %v1286
    %v1426 = vunpack.c.l.b16 %v1287
    %v1427 = vunpack.c.l.b16 %v1288
    %v1428 = vunpack.c.l.b16 %v1289
    %v1429 = vunpack.c.l.b16 %v1290
    %v1430 = vunpack.c.l.b16 %v1291
    %v1431 = vunpack.c.l.b16 %v1292
    %v1432 = vpack.c.b16 %v1369, %v1368
    %v1433 = vpack.c.b16 %v1371, %v1370
    %v1434 = vpack.c.b16 %v1373, %v1372
    %v1435 = vpack.c.b16 %v1375, %v1374
    %v1436 = vpack.c.b16 %v1377, %v1376
    %v1437 = vpack.c.b16 %v1379, %v1378
    %v1438 = vpack.c.b16 %v1381, %v1380
    %v1439 = vpack.c.b16 %v1383, %v1382
    %v1440 = vpack.c.b16 %v1385, %v1384
    %v1441 = vpack.c.b16 %v1387, %v1386
    %v1442 = vpack.c.b16 %v1389, %v1388
    %v1443 = vpack.c.b16 %v1391, %v1390
    %v1444 = vpack.c.b16 %v1393, %v1392
    %v1445 = vpack.c.b16 %v1395, %v1394
    %v1446 = vpack.c.b16 %v1397, %v1396
    %v1447 = vpack.c.b16 %v1399, %v1398
    %v1448 = vpack.c.b16 %v1401, %v1400
    %v1449 = vpack.c.b16 %v1403, %v1402
    %v1450 = vpack.c.b16 %v1405, %v1404
    %v1451 = vpack.c.b16 %v1407, %v1406
    %v1452 = vpack.c.b16 %v1409, %v1408
    %v1453 = vpack.c.b16 %v1411, %v1410
    %v1454 = vpack.c.b16 %v1413, %v1412
    %v1455 = vpack.c.b16 %v1415, %v1414
    %v1456 = vpack.c.b16 %v1417, %v1416
    %v1457 = vpack.c.b16 %v1419, %v1418
    %v1458 = vpack.c.b16 %v1421, %v1420
    %v1459 = vpack.c.b16 %v1423, %v1422
    %v1460 = vpack.c.b16 %v1425, %v1424
    %v1461 = vpack.c.b16 %v1427, %v1426
    %v1462 = vpack.c.b16 %v1429, %v1428
    %v1463 = vpack.c.b16 %v1431, %v1430
    %1496 = vmatprep.subr.bf16.mxu0 0
    %1497 = vmatpush1.bf16.msra.mxu0 %v1432
    %1498 = vmatprep.subr.bf16.mxu0 0
    %1499 = vmatpush1.bf16.msra.mxu0 %v1433
    %1500 = vmatprep.subr.bf16.mxu0 0
    %1501 = vmatpush1.bf16.msra.mxu0 %v1434
    %1502 = vmatprep.subr.bf16.mxu0 0
    %1503 = vmatpush1.bf16.msra.mxu0 %v1435
    %1504 = vmatprep.subr.bf16.mxu0 0
    %1505 = vmatpush1.bf16.msra.mxu0 %v1436
    %1506 = vmatprep.subr.bf16.mxu0 0
    %1507 = vmatpush1.bf16.msra.mxu0 %v1437
    %1508 = vmatprep.subr.bf16.mxu0 0
    %1509 = vmatpush1.bf16.msra.mxu0 %v1438
    %1510 = vmatprep.subr.bf16.mxu0 0
    %1511 = vmatpush1.bf16.msra.mxu0 %v1439
    %1512 = vmatprep.subr.bf16.mxu0 0
    %1513 = vmatpush1.bf16.msra.mxu0 %v1440
    %1514 = vmatprep.subr.bf16.mxu0 0
    %1515 = vmatpush1.bf16.msra.mxu0 %v1441
    %1516 = vmatprep.subr.bf16.mxu0 0
    %1517 = vmatpush1.bf16.msra.mxu0 %v1442
    %1518 = vmatprep.subr.bf16.mxu0 0
    %1519 = vmatpush1.bf16.msra.mxu0 %v1443
    %1520 = vmatprep.subr.bf16.mxu0 0
    %1521 = vmatpush1.bf16.msra.mxu0 %v1444
    %1522 = vmatprep.subr.bf16.mxu0 0
    %1523 = vmatpush1.bf16.msra.mxu0 %v1445
    %1524 = vmatprep.subr.bf16.mxu0 0
    %1525 = vmatpush1.bf16.msra.mxu0 %v1446
    %1526 = vmatprep.subr.bf16.mxu0 0
    %1527 = vmatpush1.bf16.msra.mxu0 %v1447
    %1528 = vmatprep.mubr.bf16.mxu0 %v1294
    %1529 = vmatmul.mubr.bf16.gmra.mrb[0].mxu0 %v1293
    %v1530 = vpop.f32.mrb[0].mxu0
    %v1531 = vadd.f32 %v1302, %v1530
    %v1532 = vpop.f32.mrb[0].mxu0
    %v1533 = vpop.f32.mrb[0].mxu0
    %v1534 = vpop.f32.mrb[0].mxu0
    %1535 = vdwg.mxu0
    %1536 = vmatprep.subr.bf16.mxu0 0
    %1537 = vmatpush1.bf16.msra.mxu0 %v1448
    %1538 = vmatprep.subr.bf16.mxu0 0
    %1539 = vmatpush1.bf16.msra.mxu0 %v1449
    %1540 = vmatprep.subr.bf16.mxu0 0
    %1541 = vmatpush1.bf16.msra.mxu0 %v1450
    %1542 = vmatprep.subr.bf16.mxu0 0
    %1543 = vmatpush1.bf16.msra.mxu0 %v1451
    %1544 = vmatprep.subr.bf16.mxu0 0
    %1545 = vmatpush1.bf16.msra.mxu0 %v1452
    %1546 = vmatprep.subr.bf16.mxu0 0
    %1547 = vmatpush1.bf16.msra.mxu0 %v1453
    %1548 = vmatprep.subr.bf16.mxu0 0
    %1549 = vmatpush1.bf16.msra.mxu0 %v1454
    %1550 = vmatprep.subr.bf16.mxu0 0
    %1551 = vmatpush1.bf16.msra.mxu0 %v1455
    %1552 = vmatprep.subr.bf16.mxu0 0
    %1553 = vmatpush1.bf16.msra.mxu0 %v1456
    %1554 = vmatprep.subr.bf16.mxu0 0
    %1555 = vmatpush1.bf16.msra.mxu0 %v1457
    %1556 = vmatprep.subr.bf16.mxu0 0
    %1557 = vmatpush1.bf16.msra.mxu0 %v1458
    %1558 = vmatprep.subr.bf16.mxu0 0
    %1559 = vmatpush1.bf16.msra.mxu0 %v1459
    %1560 = vmatprep.subr.bf16.mxu0 0
    %1561 = vmatpush1.bf16.msra.mxu0 %v1460
    %1562 = vmatprep.subr.bf16.mxu0 0
    %1563 = vmatpush1.bf16.msra.mxu0 %v1461
    %1564 = vmatprep.subr.bf16.mxu0 0
    %1565 = vmatpush1.bf16.msra.mxu0 %v1462
    %1566 = vmatprep.subr.bf16.mxu0 0
    %1567 = vmatpush1.bf16.msra.mxu0 %v1463
    %1568 = vmatprep.mubr.bf16.mxu0 %v1296
    %1569 = vmatmul.mubr.bf16.gmra.mrb[0].mxu0 %v1295
    %v1570 = vpop.f32.mrb[0].mxu0
    %v1571 = vadd.f32 %v1531, %v1570
    %v1572 = vpop.f32.mrb[0].mxu0
    %v1573 = vpop.f32.mrb[0].mxu0
    %v1574 = vpop.f32.mrb[0].mxu0
    %1575 = vdwg.mxu0
    %1577 = vset.pattern.permute.xlu0 0
    %1578 = vperm.xlu0 %1577, %v1571
    %v1579 = vpop.permute.xlu0 %1578
    %v1581 = vadd.f32 %v1579, %v1571
    %1582 = vrot.lane.b32.xlu0 %v1571, 127
    %v1583 = vpop.permute.xlu0 %1582
    %vm1585 = vcmask 9216
    %v1586 = vsel %vm1585, %v1583, 0.0
    %1587 = vadd.xlane.f32.xlu0 %v1586
    %v1588 = vpop.xlane.xlu0 %1587
    %v1589 = vrcp.pop 2.0
    %v1590 = vmul.f32 %v1588, %v1589
    %v1591 = vsub.f32 %v1581, %v1590
    %1593 = vrot.lane.b32.xlu0 %v1591, 127
    %v1594 = vpop.permute.xlu0 %1593
    %1596 = vst.msk [vmem:[#allocation5] sm:$0x3] %vm1585, %v1594
    // Predicated region
    $region34: #{tpu_custom_call.1} parent=1 // pred_check
      _
    $region35: #{tpu_custom_call.1} parent=1 // pred_check_branch
      %1598 = sbr.rel (0) target = $region37
    $region36: #{tpu_custom_call.1} parent=1 // pred_region
      %s1600 = ssub.s32 32, 32
      %1601 = vsyncadd [#allocation4], %s1600
      %s1603 = sshll.u32 [#allocation5], 4
      %s1604 = int_to_ptr.vmem [resolvable:$true] %s1603
      %1606 = dma.vmem_to_hbm [thread:$0]  %s1604, 32, %s7, [#allocation4]
    $region37: #{tpu_custom_call.1} parent=1 // pred_fallthru
      _
    // Predicated region
    $region38: #{tpu_custom_call.1} parent=1 // pred_check
      _
    $region39: #{tpu_custom_call.1} parent=1 // pred_check_branch
      %1608 = sbr.rel (0) target = $region41
    $region40: #{tpu_custom_call.1} parent=1 // pred_region
      %1609 = dma.done [#allocation4], 32
    $region41: #{tpu_custom_call.1} parent=1 // pred_fallthru
      _
    %1610 = vsyncpa [#allocation3], 1
    %1611 = vsyncpa [#allocation4], 1

</llo_original>
